<compile_context>
chip_gen: v7x
topology: tpu7x:2x2x1
jax: 0.10.0
libtpu: 0.0.40
codegen_flags: <defaults>
</compile_context>

<pallas_src>
import math

import jax
import jax.numpy as jnp
from jax.experimental import pallas as pl
from jax.experimental.pallas import tpu as pltpu


def _affine_kernel(x_ref, z_ref, p_ref, x_out, z_out):
    # p_ref is (4, cols) float32: rows = [ax, bx, az, bz]; broadcast over rows.
    ax = p_ref[0:1, :]
    bx = p_ref[1:2, :]
    az = p_ref[2:3, :]
    bz = p_ref[3:4, :]
    x_out[...] = (x_ref[...].astype(jnp.float32) * ax + bx).astype(x_out.dtype)
    z_out[...] = (z_ref[...].astype(jnp.float32) * az + bz).astype(z_out.dtype)


def _choose_layout(B, T, D):
    """Pick a lane-dense 2D (rows, cols, rep) view of (B, T, D)."""
    n = B * T * D
    if D % 128 == 0:
        return B * T, D, 1
    # Fold to lcm(D, 128) lanes when possible (keeps stores unmasked for D
    # like 32, 64, 96, 192, ... at zero extra data movement).
    cols = (D * 128) // math.gcd(D, 128)
    if cols <= 512 and n % cols == 0:
        return n // cols, cols, cols // D
    # Fallback: keep D as the (possibly lane-sparse) last dim.
    # TODO(synk): masked partial stores in this branch; acceptable for odd D.
    return B * T, D, 1


def _vmem_physical_bytes():
    try:
        info = pltpu.get_tpu_info()
        return int(getattr(info, "vmem_capacity_bytes", 64 << 20))
    except Exception:
        return 64 << 20  # conservative (v7x-sized)


def _pick_block_rows(rows, cols, itemsize, budget_bytes):
    """Byte-budgeted row block: 4 data streams x double buffer must fit."""
    bytes_per_row = 4 * 2 * cols * itemsize
    br = budget_bytes // bytes_per_row
    br = int((br // 8) * 8)
    br = max(br, 8)
    if br >= rows:
        if rows >= 16:
            # Force >= 2 grid steps: pipelining overlap + v7x 2-TC sharding.
            br = ((rows + 1) // 2 + 7) // 8 * 8
        else:
            br = rows  # single full-extent block (allowed even if < 8)
    return br


def act_norm_aug_forward(x, z, params, sample: bool = False):
    B, T, D = x.shape
    assert z.shape == (B, T, D)

    ls = params["log_scale"].reshape(D).astype(jnp.float32)
    sh = params["shift"].reshape(D).astype(jnp.float32)
    lsa = params["log_scale_aug"].reshape(D).astype(jnp.float32)
    sha = params["shift_aug"].reshape(D).astype(jnp.float32)

    # Hoisted parameter math (done once in XLA, not per grid step).
    if not sample:
        # y = exp(log_scale) * x + shift
        ax, bx = jnp.exp(ls), sh
        az, bz = jnp.exp(lsa), sha
    else:
        # y = (x - shift) * exp(-log_scale)  ==  x * a + b  with b = -shift * a
        ax = jnp.exp(-ls)
        bx = -sh * ax
        az = jnp.exp(-lsa)
        bz = -sha * az

    rows, cols, rep = _choose_layout(B, T, D)
    if rep > 1:
        ax, bx, az, bz = (jnp.tile(v, rep) for v in (ax, bx, az, bz))
    # Single stacked f32 parameter tile: [ax; bx; az; bz]  -> one DMA stream.
    p = jnp.stack([ax, bx, az, bz], axis=0).astype(jnp.float32)  # (4, cols)

    x2 = x.reshape(rows, cols)
    z2 = z.reshape(rows, cols)
    itemsize = x.dtype.itemsize

    vmem_phys = _vmem_physical_bytes()
    budget = min(vmem_phys // 2, 64 << 20)  # ~32 MiB on v7x, ~64 MiB on v5e/v6e
    br = _pick_block_rows(rows, cols, itemsize, budget)
    grid = (pl.cdiv(rows, br),)

    data_spec = pl.BlockSpec((br, cols), lambda i: (i, 0))
    param_spec = pl.BlockSpec((4, cols), lambda i: (0, 0))

    # Tile/VMEM accounting derived from the same budget as br.
    tile_bytes = br * cols * itemsize
    param_bytes = 2 * 4 * cols * 4
    needed = 4 * 2 * tile_bytes + param_bytes + (2 << 20)
    vmem_limit = int(min(max(needed, 16 << 20), max(vmem_phys - (8 << 20), 32 << 20)))

    n_total = B * T * D
    cost = pl.CostEstimate(
        flops=4 * n_total,
        transcendentals=0,
        bytes_accessed=4 * n_total * itemsize + 4 * cols * 4,
    )

    x_out2, z_out2 = pl.pallas_call(
        _affine_kernel,
        out_shape=(jax.ShapeDtypeStruct((rows, cols), x.dtype),
                   jax.ShapeDtypeStruct((rows, cols), z.dtype)),
        grid=grid,
        in_specs=[data_spec, data_spec, param_spec],
        out_specs=(data_spec, data_spec),
        compiler_params=pltpu.CompilerParams(
            dimension_semantics=("parallel",),
            vmem_limit_bytes=vmem_limit),
        cost_estimate=cost,
    )(x2, z2, p)

    x_out = x_out2.reshape(B, T, D)
    z_out = z_out2.reshape(B, T, D)

    # ldj: scalar broadcast, computed in the wrapper (sign flip for sample).
    ldj_scalar = jnp.sum(ls) + jnp.sum(lsa)
    if sample:
        ldj_scalar = -ldj_scalar
    ldj = jnp.broadcast_to(ldj_scalar.astype(jnp.float32).reshape(1, 1, 1),
                           (B, T, 1))

    return x_out, z_out, ldj


def initialize_params(x, z, ndim):
    """Mirrors ActNormAug._initialize (torch .std uses Bessel correction)."""
    def _init(v):
        std = jnp.std(v, axis=(0, 1), ddof=1).reshape(1, 1, ndim)
        mu = jnp.mean(v / std, axis=(0, 1)).reshape(1, 1, ndim)
        return -jnp.log(std + 1e-6), -mu

    log_scale, shift = _init(x)
    log_scale_aug, shift_aug = _init(z)
    return {
        "log_scale": log_scale.astype(jnp.float32),
        "shift": shift.astype(jnp.float32),
        "log_scale_aug": log_scale_aug.astype(jnp.float32),
        "shift_aug": shift_aug.astype(jnp.float32),
    }


if __name__ == "__main__":
    key = jax.random.PRNGKey(0)
    B, T, D = 2, 8, 32
    kx, kz = jax.random.split(key)
    x = jax.random.normal(kx, (B, T, D), jnp.float32) * 2.0 + 1.0
    z = jax.random.normal(kz, (B, T, D), jnp.float32) * 0.5 - 0.3

    # First-forward data-dependent initialization (is_initialized == False path).
    params = initialize_params(x, z, D)

    x_out, z_out, ldj = act_norm_aug_forward(x, z, params, sample=False)
    jax.block_until_ready((x_out, z_out, ldj))

    # Pure-JAX reference check of the non-sample forward path.
    x_ref = jnp.exp(params["log_scale"]) * x + params["shift"]
    z_ref = jnp.exp(params["log_scale_aug"]) * z + params["shift_aug"]
    ldj_ref = (jnp.sum(params["log_scale"]) + jnp.sum(params["log_scale_aug"])
               ) * jnp.ones((B, T, 1), jnp.float32)
    assert jnp.allclose(x_out, x_ref, atol=1e-5, rtol=1e-5)
    assert jnp.allclose(z_out, z_ref, atol=1e-5, rtol=1e-5)
    assert jnp.allclose(ldj, ldj_ref, atol=1e-5, rtol=1e-5)

    # Exercise the sample=True (inverse) path and confirm invertibility
    # (inverse uses multiply by precomputed exp(-log_scale), not divide).
    x_inv, z_inv, ldj_inv = act_norm_aug_forward(x_out, z_out, params, sample=True)
    jax.block_until_ready((x_inv, z_inv, ldj_inv))
    x_inv_ref = (x_out - params["shift"]) / jnp.exp(params["log_scale"])
    z_inv_ref = (z_out - params["shift_aug"]) / jnp.exp(params["log_scale_aug"])
    assert jnp.allclose(x_inv, x_inv_ref, atol=1e-5, rtol=1e-5)
    assert jnp.allclose(z_inv, z_inv_ref, atol=1e-5, rtol=1e-5)
    assert jnp.allclose(x_inv, x, atol=1e-4, rtol=1e-4)
    assert jnp.allclose(z_inv, z, atol=1e-4, rtol=1e-4)
    assert jnp.allclose(ldj_inv, -ldj_ref, atol=1e-5, rtol=1e-5)

    print("KERNEL_OK")
</pallas_src>

<mosaic_0001>
module attributes {stable_mosaic.version = 11 : i64} {
  func.func @_affine_kernel(%arg0: i32, %arg1: memref<4x128xf32, #tpu.memory_space<vmem>>, %arg2: memref<4x128xf32, #tpu.memory_space<vmem>>, %arg3: memref<4x128xf32, #tpu.memory_space<vmem>>, %arg4: memref<4x128xf32, #tpu.memory_space<vmem>>, %arg5: memref<4x128xf32, #tpu.memory_space<vmem>>) attributes {dimension_semantics = [#tpu.dimension_semantics<parallel>], iteration_bounds = array<i64: 1>, scalar_prefetch = 0 : i64, scratch_operands = 0 : i64, tpu.core_type = #tpu.core_type<tc>, window_params = [{transform_indices = @transform_0, window_bounds = array<i64: 4, 128>}, {transform_indices = @transform_1, window_bounds = array<i64: 4, 128>}, {pipeline_mode = #tpu.pipeline_mode<synchronous>, transform_indices = @transform_2, window_bounds = array<i64: 4, 128>}, {transform_indices = @transform_3, window_bounds = array<i64: 4, 128>}, {transform_indices = @transform_4, window_bounds = array<i64: 4, 128>}]} {
    %c0 = arith.constant 0 : index
    %c0_0 = arith.constant 0 : index
    %0 = vector.load %arg3[%c0, %c0_0] : memref<4x128xf32, #tpu.memory_space<vmem>>, vector<1x128xf32>
    %c1 = arith.constant 1 : index
    %c0_1 = arith.constant 0 : index
    %1 = vector.load %arg3[%c1, %c0_1] : memref<4x128xf32, #tpu.memory_space<vmem>>, vector<1x128xf32>
    %c2 = arith.constant 2 : index
    %c0_2 = arith.constant 0 : index
    %2 = vector.load %arg3[%c2, %c0_2] : memref<4x128xf32, #tpu.memory_space<vmem>>, vector<1x128xf32>
    %c3 = arith.constant 3 : index
    %c0_3 = arith.constant 0 : index
    %3 = vector.load %arg3[%c3, %c0_3] : memref<4x128xf32, #tpu.memory_space<vmem>>, vector<1x128xf32>
    %c0_4 = arith.constant 0 : index
    %c0_5 = arith.constant 0 : index
    %4 = vector.load %arg1[%c0_4, %c0_5] : memref<4x128xf32, #tpu.memory_space<vmem>>, vector<4x128xf32>
    %5 = vector.broadcast %0 : vector<1x128xf32> to vector<4x128xf32>
    %6 = arith.mulf %4, %5 : vector<4x128xf32>
    %7 = vector.broadcast %1 : vector<1x128xf32> to vector<4x128xf32>
    %8 = arith.addf %6, %7 : vector<4x128xf32>
    %c0_6 = arith.constant 0 : index
    %c0_7 = arith.constant 0 : index
    %9 = vector.load %arg4[%c0_6, %c0_7] : memref<4x128xf32, #tpu.memory_space<vmem>>, vector<4x128xf32>
    tpu.vector_store %arg4[%c0_6, %c0_7], %8 {strides = array<i32>} : memref<4x128xf32, #tpu.memory_space<vmem>>, vector<4x128xf32>,
    %c0_8 = arith.constant 0 : index
    %c0_9 = arith.constant 0 : index
    %10 = vector.load %arg2[%c0_8, %c0_9] : memref<4x128xf32, #tpu.memory_space<vmem>>, vector<4x128xf32>
    %11 = vector.broadcast %2 : vector<1x128xf32> to vector<4x128xf32>
    %12 = arith.mulf %10, %11 : vector<4x128xf32>
    %13 = vector.broadcast %3 : vector<1x128xf32> to vector<4x128xf32>
    %14 = arith.addf %12, %13 : vector<4x128xf32>
    %c0_10 = arith.constant 0 : index
    %c0_11 = arith.constant 0 : index
    %15 = vector.load %arg5[%c0_10, %c0_11] : memref<4x128xf32, #tpu.memory_space<vmem>>, vector<4x128xf32>
    tpu.vector_store %arg5[%c0_10, %c0_11], %14 {strides = array<i32>} : memref<4x128xf32, #tpu.memory_space<vmem>>, vector<4x128xf32>,
    return
  }
  func.func @transform_0(%arg0: i32) -> (i32, i32) {
    %c0_i32 = arith.constant 0 : i32
    %c0_i32_0 = arith.constant 0 : i32
    return %arg0, %c0_i32 : i32, i32
  }
  func.func @transform_1(%arg0: i32) -> (i32, i32) {
    %c0_i32 = arith.constant 0 : i32
    %c0_i32_0 = arith.constant 0 : i32
    return %arg0, %c0_i32 : i32, i32
  }
  func.func @transform_2(%arg0: i32) -> (i32, i32) {
    %c0_i32 = arith.constant 0 : i32
    %c0_i32_0 = arith.constant 0 : i32
    %c0_i32_1 = arith.constant 0 : i32
    return %c0_i32, %c0_i32_0 : i32, i32
  }
  func.func @transform_3(%arg0: i32) -> (i32, i32) {
    %c0_i32 = arith.constant 0 : i32
    %c0_i32_0 = arith.constant 0 : i32
    return %arg0, %c0_i32 : i32, i32
  }
  func.func @transform_4(%arg0: i32) -> (i32, i32) {
    %c0_i32 = arith.constant 0 : i32
    %c0_i32_0 = arith.constant 0 : i32
    return %arg0, %c0_i32 : i32, i32
  }
}

</mosaic_0001>

<llo_original>
// kernel: tpu_custom_call.1
$region0: #{tpu_custom_call.1}
  #allocation0 [shape = 'u32[]', space=smem, size = 0x4, offset = 0x4, fixed_abs, tag = 'smem constant byte address 0x4 - core index']
  #allocation1 [shape = 'u32[144,128]{1,0:T(1,128)}', space=vmem, size = 0x12000, scoped, tag = 'internal scratch']
  %s0 = inlined_call_operand.hbm [shape: f32[4,128], index: 0, kind: input, shape index: {}]
  %s1 = inlined_call_operand.hbm [shape: f32[4,128], index: 1, kind: input, shape index: {}]
  %s2 = inlined_call_operand.vmem [shape: f32[4,128], index: 2, kind: input, shape index: {}]
  %s3 = inlined_call_operand.hbm [shape: f32[4,128], index: 3, kind: output, shape index: {0}]
  %s4 = inlined_call_operand.hbm [shape: f32[4,128], index: 4, kind: output, shape index: {1}]
  %5 = xla_tuple %s3, %s4
  %s6 = sld [smem:[#allocation0]]
  $region38: #{tpu_custom_call.1} parent=0
    _
  %s8 = ssub.s32 1, %s6
  %s9 = scalar_select 0, %s8, %s6
  $region1: #{tpu_custom_call.1} parent=0
    #allocation2 [shape = 'u8[2048]{0}', space=vmem, size = 0x800, scoped, tag = 'input window, operand 0, single buffered']
    #allocation3 [shape = 's32[1]{0}', space=sflag, size = 0x4, scoped, tag = 'scoped memory for tpu_custom_call.1']
    #allocation4 [shape = 's32[1]{0}', space=sflag, size = 0x4, scoped, tag = 'scoped memory for tpu_custom_call.1']
    #allocation5 [shape = 'u8[2048]{0}', space=vmem, size = 0x800, scoped, tag = 'input window, operand 1, single buffered']
    #allocation6 [shape = 's32[1]{0}', space=sflag, size = 0x4, scoped, tag = 'scoped memory for tpu_custom_call.1']
    #allocation7 [shape = 'u8[2048]{0}', space=vmem, size = 0x800, scoped, tag = 'output window, operand 0, single buffered']
    #allocation8 [shape = 'u8[2048]{0}', space=vmem, size = 0x800, scoped, tag = 'output window, operand 1, single buffered']
    #allocation9 [shape = 's32[1]{0}', space=sflag, size = 0x4, scoped, tag = 'scoped memory for tpu_custom_call.1']
    %10 = vsyncpa [#allocation3], 0
    %11 = vsyncpa [#allocation6], 0
    %12 = vsyncpa [#allocation4], 0
    %13 = vsyncpa [#allocation9], 0
    // Predicated region
    $region2: #{tpu_custom_call.1} parent=1 // pred_check
      _
    $region3: #{tpu_custom_call.1} parent=1 // pred_check_branch
      %15 = sbr.rel (0) target = $region5
    $region4: #{tpu_custom_call.1} parent=1 // pred_region
      %s17 = ssub.s32 64, 64
      %18 = vsyncadd [#allocation3], %s17
      %s20 = sshll.u32 [#allocation2], 4
      %s21 = int_to_ptr.vmem [resolvable:$true] %s20
      %23 = dma.hbm_to_vmem [thread:$0]  %s0, 64, %s21, [#allocation3]
    $region5: #{tpu_custom_call.1} parent=1 // pred_fallthru
      _
    // Predicated region
    $region6: #{tpu_custom_call.1} parent=1 // pred_check
      _
    $region7: #{tpu_custom_call.1} parent=1 // pred_check_branch
      %25 = sbr.rel (0) target = $region9
    $region8: #{tpu_custom_call.1} parent=1 // pred_region
      %s27 = ssub.s32 64, 64
      %28 = vsyncadd [#allocation6], %s27
      %s30 = sshll.u32 [#allocation5], 4
      %s31 = int_to_ptr.vmem [resolvable:$true] %s30
      %33 = dma.hbm_to_vmem [thread:$0]  %s1, 64, %s31, [#allocation6]
    $region9: #{tpu_custom_call.1} parent=1 // pred_fallthru
      _
    // Predicated region
    $region10: #{tpu_custom_call.1} parent=1 // pred_check
      _
    $region11: #{tpu_custom_call.1} parent=1 // pred_check_branch
      %35 = sbr.rel (0) target = $region13
    $region12: #{tpu_custom_call.1} parent=1 // pred_region
      _
    $region13: #{tpu_custom_call.1} parent=1 // pred_fallthru
      _
    // Predicated region
    $region14: #{tpu_custom_call.1} parent=1 // pred_check
      _
    $region15: #{tpu_custom_call.1} parent=1 // pred_check_branch
      %37 = sbr.rel (0) target = $region17
    $region16: #{tpu_custom_call.1} parent=1 // pred_region
      %38 = dma.done [#allocation3], 64
    $region17: #{tpu_custom_call.1} parent=1 // pred_fallthru
      _
    // Predicated region
    $region18: #{tpu_custom_call.1} parent=1 // pred_check
      _
    $region19: #{tpu_custom_call.1} parent=1 // pred_check_branch
      %40 = sbr.rel (0) target = $region21
    $region20: #{tpu_custom_call.1} parent=1 // pred_region
      %41 = dma.done [#allocation6], 64
    $region21: #{tpu_custom_call.1} parent=1 // pred_fallthru
      _
    %v42 = vld [vmem:[%s2] sm:$0x1]
    %v43 = vld [vmem:[%s2 + $0x1] sm:$0x1]
    %v44 = vld [vmem:[%s2 + $0x2] sm:$0x1]
    %v45 = vld [vmem:[%s2 + $0x3] sm:$0x1]
    %v46 = vld [vmem:[#allocation2] sm:$0xf]
    %v47 = vlaneseq
    %v48 = vshrl.u32 %v47, 7
    %v49 = vsub.s32 0, %v48
    %v50 = vrot.slane %v42, %v49
    %v51 = vmul.f32 %v46, %v50
    %v52 = vlaneseq
    %v53 = vshrl.u32 %v52, 7
    %v54 = vsub.s32 0, %v53
    %v55 = vrot.slane %v43, %v54
    %v56 = vadd.f32 %v51, %v55
    %57 = vst [vmem:[#allocation7] sm:$0xf] %v56
    %v58 = vld [vmem:[#allocation5] sm:$0xf]
    %v59 = vlaneseq
    %v60 = vshrl.u32 %v59, 7
    %v61 = vsub.s32 0, %v60
    %v62 = vrot.slane %v44, %v61
    %v63 = vmul.f32 %v58, %v62
    %v64 = vlaneseq
    %v65 = vshrl.u32 %v64, 7
    %v66 = vsub.s32 0, %v65
    %v67 = vrot.slane %v45, %v66
    %v68 = vadd.f32 %v63, %v67
    %69 = vst [vmem:[#allocation8] sm:$0xf] %v68
    // Predicated region
    $region22: #{tpu_custom_call.1} parent=1 // pred_check
      _
    $region23: #{tpu_custom_call.1} parent=1 // pred_check_branch
      %71 = sbr.rel (0) target = $region25
    $region24: #{tpu_custom_call.1} parent=1 // pred_region
      %s73 = ssub.s32 64, 64
      %74 = vsyncadd [#allocation4], %s73
      %s76 = sshll.u32 [#allocation7], 4
      %s77 = int_to_ptr.vmem [resolvable:$true] %s76
      %79 = dma.vmem_to_hbm [thread:$0]  %s77, 64, %s3, [#allocation4]
    $region25: #{tpu_custom_call.1} parent=1 // pred_fallthru
      _
    // Predicated region
    $region26: #{tpu_custom_call.1} parent=1 // pred_check
      _
    $region27: #{tpu_custom_call.1} parent=1 // pred_check_branch
      %81 = sbr.rel (0) target = $region29
    $region28: #{tpu_custom_call.1} parent=1 // pred_region
      %s83 = ssub.s32 64, 64
      %84 = vsyncadd [#allocation9], %s83
      %s86 = sshll.u32 [#allocation8], 4
      %s87 = int_to_ptr.vmem [resolvable:$true] %s86
      %89 = dma.vmem_to_hbm [thread:$0]  %s87, 64, %s4, [#allocation9]
    $region29: #{tpu_custom_call.1} parent=1 // pred_fallthru
      _
    // Predicated region
    $region30: #{tpu_custom_call.1} parent=1 // pred_check
      _
    $region31: #{tpu_custom_call.1} parent=1 // pred_check_branch
      %91 = sbr.rel (0) target = $region33
    $region32: #{tpu_custom_call.1} parent=1 // pred_region
      %92 = dma.done [#allocation4], 64
    $region33: #{tpu_custom_call.1} parent=1 // pred_fallthru
      _
    // Predicated region
    $region34: #{tpu_custom_call.1} parent=1 // pred_check
      _
    $region35: #{tpu_custom_call.1} parent=1 // pred_check_branch
      %94 = sbr.rel (0) target = $region37
    $region36: #{tpu_custom_call.1} parent=1 // pred_region
      %95 = dma.done [#allocation9], 64
    $region37: #{tpu_custom_call.1} parent=1 // pred_fallthru
      _
    %96 = vsyncpa [#allocation3], 1
    %97 = vsyncpa [#allocation6], 1
    %98 = vsyncpa [#allocation4], 1
    %99 = vsyncpa [#allocation9], 1

</llo_original>
